<compile_context>
chip_gen: v7x
topology: tpu7x:2x2x1
jax: 0.10.0
libtpu: 0.0.40
codegen_flags: <defaults>
</compile_context>

<pallas_src>
import functools
import math

import jax
import jax.numpy as jnp
from jax.experimental import pallas as pl
from jax.experimental.pallas import tpu as pltpu


# Per-grid-step tile budget (input block + output block, single buffer).  The
# Pallas pipeline double-buffers, so 6 MiB keeps the total (~12 MiB) under the
# smallest default scoped-VMEM limit (16 MiB on v5e) and far under v7x's 64 MiB.
_TILE_BUDGET_BYTES = 6 * 1024 * 1024
# Only split a (1, 1) grid for megacore when there is enough data that the
# ~0.35 us/step overhead is irrelevant.
_MIN_SPLIT_ELEMS = 256 * 1024


def _d2a_kernel(idx_ref, out_ref, *, scale):
    """out = idx * (2/Q) - 1  (pure VPU elementwise on the whole tile)."""
    idx = idx_ref[...]
    if idx.dtype != jnp.int32:
        idx = idx.astype(jnp.int32)  # widen narrow integer dtypes first (robust lowering)
    out_ref[...] = (idx.astype(jnp.float32) * scale - 1.0).astype(out_ref.dtype)


def _sublane_multiple(dtype) -> int:
    """Dense sublane-packing multiple for a dtype (8 for 32-bit, 16 bf16, 32 int8)."""
    return 8 * max(1, 4 // jnp.dtype(dtype).itemsize)


def _round_up(x, m):
    return -(-x // m) * m


def _choose_2d_shape(shape, n):
    """Pick a lane-dense (rows, cols) 2D view of the n flat elements."""
    last = shape[-1] if len(shape) >= 1 else n
    if last >= 128 and last % 128 == 0:
        return n // last, last
    # Elementwise op: any factorization is valid — prefer a lane-dense one.
    for c in (2048, 1024, 512, 256, 128):
        if n % c == 0:
            return n // c, c
    # Odd shapes: keep the trailing dim (edge stores get masked; unavoidable).
    if len(shape) >= 2:
        return n // last, last
    return 1, n


def _choose_tiles(rows, cols, in_dtype, out_dtype):
    """Fixed VMEM-budgeted tiles; grid uses pl.cdiv so ragged edges are fine."""
    bpe = jnp.dtype(in_dtype).itemsize + jnp.dtype(out_dtype).itemsize
    budget_elems = _TILE_BUDGET_BYTES // bpe
    sub = max(_sublane_multiple(in_dtype), _sublane_multiple(out_dtype))

    # Lane axis: full rows (one contiguous HBM range per buffer) if at least
    # `sub` rows fit the budget, else the largest 128-multiple that does.
    if cols <= 128 or cols * sub <= budget_elems:
        tt = cols
    else:
        tt = max(128, min((cols // 128) * 128, ((budget_elems // sub) // 128) * 128))

    # Sublane axis: as many rows as the budget allows (full extent if it fits).
    tb_cap = max(sub, ((budget_elems // tt) // sub) * sub)
    tb = rows if rows <= tb_cap else tb_cap

    # Megacore (v7x): make sure large inputs get at least 2 grid steps so both
    # TensorCores stream HBM.  No-op overhead on v5e/v6e (single TC).
    if rows * cols >= _MIN_SPLIT_ELEMS and pl.cdiv(rows, tb) == 1 and pl.cdiv(cols, tt) == 1:
        split_tb = _round_up(pl.cdiv(rows, 2), sub)
        if split_tb < rows:
            tb = split_tb
        elif cols >= 256:
            split_tt = _round_up(pl.cdiv(cols, 2), 128)
            if split_tt < cols:
                tt = split_tt
    return tb, tt


def digital2analog(idx, num_input_quantization_channels, *,
                   out_dtype=jnp.float32, min_pallas_elements=0):
    """idx: integer array (any shape/int dtype), values in [0, Q).
    Returns same-shape array of `out_dtype` in [-1, 1)."""
    q = num_input_quantization_channels
    scale = 2.0 / float(q)
    orig_shape = idx.shape
    n = math.prod(orig_shape) if orig_shape else 1

    if n == 0:
        return jnp.zeros(orig_shape, out_dtype)

    # Tiny inputs are better fused into the surrounding jit than paying a
    # standalone kernel launch (disabled by default so this call tests Pallas).
    if n < min_pallas_elements:
        return (idx.astype(jnp.float32) * scale - 1.0).astype(out_dtype)

    rows, cols = _choose_2d_shape(orig_shape, n)
    idx2 = idx.reshape(rows, cols)
    tb, tt = _choose_tiles(rows, cols, idx2.dtype, out_dtype)

    kernel = functools.partial(_d2a_kernel, scale=scale)
    out2 = pl.pallas_call(
        kernel,
        out_shape=jax.ShapeDtypeStruct((rows, cols), out_dtype),
        grid_spec=pltpu.PrefetchScalarGridSpec(
            num_scalar_prefetch=0,
            grid=(pl.cdiv(rows, tb), pl.cdiv(cols, tt)),
            in_specs=[pl.BlockSpec((tb, tt), lambda i, j: (i, j))],
            out_specs=pl.BlockSpec((tb, tt), lambda i, j: (i, j)),
        ),
        compiler_params=pltpu.CompilerParams(
            dimension_semantics=("parallel", "parallel"),
            vmem_limit_bytes=32 * 1024 * 1024,
        ),
    )(idx2)
    return out2.reshape(orig_shape)


def make_d2a_table(num_input_quantization_channels):
    """Deterministic init mirroring Digital2Analog.init_input_embeddings
    (used only by the pure-JAX reference check)."""
    q = num_input_quantization_channels
    return -1.0 + (2.0 / q) * jnp.arange(q, dtype=jnp.float32)


if __name__ == "__main__":
    Q = 256  # typical mu-law quantization channel count
    key = jax.random.PRNGKey(0)
    table = make_d2a_table(Q)

    # 1) Standard path: int32 indices, float32 output, lane-dense (8, 1024).
    k1, k2, k3 = jax.random.split(key, 3)
    idx_i32 = jax.random.randint(k1, (8, 1024), minval=0, maxval=Q, dtype=jnp.int32)
    out = jax.block_until_ready(digital2analog(idx_i32, Q))
    ref = jnp.take(table, idx_i32)
    assert out.shape == idx_i32.shape and out.dtype == jnp.float32
    assert jnp.allclose(out, ref), "int32/f32 path mismatch vs reference lookup"

    # 2) Narrow I/O path: uint8 indices in, bfloat16 out (roofline-moving levers).
    idx_u8 = jax.random.randint(k2, (16, 512), minval=0, maxval=Q,
                                dtype=jnp.int32).astype(jnp.uint8)
    out_bf16 = jax.block_until_ready(
        digital2analog(idx_u8, Q, out_dtype=jnp.bfloat16))
    ref_bf16 = jnp.take(table, idx_u8.astype(jnp.int32)).astype(jnp.bfloat16)
    assert out_bf16.shape == idx_u8.shape and out_bf16.dtype == jnp.bfloat16
    assert jnp.allclose(out_bf16.astype(jnp.float32), ref_bf16.astype(jnp.float32),
                        atol=2.0 / Q), "uint8/bf16 path mismatch vs reference lookup"

    # 3) Awkward shape path (trailing dim < 128, not factorable to 128 lanes).
    idx_odd = jax.random.randint(k3, (5, 96), minval=0, maxval=Q, dtype=jnp.int32)
    out_odd = jax.block_until_ready(digital2analog(idx_odd, Q))
    ref_odd = jnp.take(table, idx_odd)
    assert out_odd.shape == idx_odd.shape and out_odd.dtype == jnp.float32
    assert jnp.allclose(out_odd, ref_odd), "odd-shape path mismatch vs reference lookup"

    print("KERNEL_OK")
</pallas_src>

<mosaic_0001>
module attributes {stable_mosaic.version = 11 : i64} {
  func.func @_d2a_kernel(%arg0: i32, %arg1: i32, %arg2: memref<8x1024xi32, #tpu.memory_space<vmem>>, %arg3: memref<8x1024xf32, #tpu.memory_space<vmem>>) attributes {dimension_semantics = [#tpu.dimension_semantics<parallel>, #tpu.dimension_semantics<parallel>], iteration_bounds = array<i64: 1, 1>, scalar_prefetch = 0 : i64, scratch_operands = 0 : i64, tpu.core_type = #tpu.core_type<tc>, window_params = [{transform_indices = @transform_0, window_bounds = array<i64: 8, 1024>}, {transform_indices = @transform_1, window_bounds = array<i64: 8, 1024>}]} {
    %c0 = arith.constant 0 : index
    %c0_0 = arith.constant 0 : index
    %0 = vector.load %arg2[%c0, %c0_0] : memref<8x1024xi32, #tpu.memory_space<vmem>>, vector<8x1024xi32>
    %1 = arith.sitofp %0 : vector<8x1024xi32> to vector<8x1024xf32>
    %cst = arith.constant 7.812500e-03 : f32
    %2 = vector.broadcast %cst : f32 to vector<8x1024xf32>
    %3 = arith.mulf %1, %2 : vector<8x1024xf32>
    %cst_1 = arith.constant 1.000000e+00 : f32
    %4 = vector.broadcast %cst_1 : f32 to vector<8x1024xf32>
    %5 = arith.subf %3, %4 : vector<8x1024xf32>
    %c0_2 = arith.constant 0 : index
    %c0_3 = arith.constant 0 : index
    %6 = vector.load %arg3[%c0_2, %c0_3] : memref<8x1024xf32, #tpu.memory_space<vmem>>, vector<8x1024xf32>
    tpu.vector_store %arg3[%c0_2, %c0_3], %5 {strides = array<i32>} : memref<8x1024xf32, #tpu.memory_space<vmem>>, vector<8x1024xf32>,
    return
  }
  func.func @transform_0(%arg0: i32, %arg1: i32) -> (i32, i32) {
    %c0_i32 = arith.constant 0 : i32
    return %arg0, %arg1 : i32, i32
  }
  func.func @transform_1(%arg0: i32, %arg1: i32) -> (i32, i32) {
    %c0_i32 = arith.constant 0 : i32
    return %arg0, %arg1 : i32, i32
  }
}

</mosaic_0001>

<llo_original>
// kernel: tpu_custom_call.1
$region0: #{tpu_custom_call.1}
  #allocation0 [shape = 'u32[]', space=smem, size = 0x4, offset = 0x4, fixed_abs, tag = 'smem constant byte address 0x4 - core index']
  #allocation1 [shape = 'u32[144,128]{1,0:T(1,128)}', space=vmem, size = 0x12000, scoped, tag = 'internal scratch']
  %s0 = inlined_call_operand.hbm [shape: s32[8,1024], index: 0, kind: input, shape index: {}]
  %s1 = inlined_call_operand.hbm [shape: f32[8,1024], index: 1, kind: output, shape index: {}]
  %s2 = sld [smem:[#allocation0]]
  $region18: #{tpu_custom_call.1} parent=0
    _
  %s4 = ssub.s32 1, %s2
  %s5 = scalar_select 0, %s4, %s2
  $region1: #{tpu_custom_call.1} parent=0
    #allocation2 [shape = 'u8[32768]{0}', space=vmem, size = 0x8000, scoped, tag = 'input window, operand 0, single buffered']
    #allocation3 [shape = 's32[1]{0}', space=sflag, size = 0x4, scoped, tag = 'scoped memory for tpu_custom_call.1']
    #allocation4 [shape = 's32[1]{0}', space=sflag, size = 0x4, scoped, tag = 'scoped memory for tpu_custom_call.1']
    #allocation5 [shape = 'u8[32768]{0}', space=vmem, size = 0x8000, scoped, tag = 'output window, operand 0, single buffered']
    %6 = vsyncpa [#allocation3], 0
    %7 = vsyncpa [#allocation4], 0
    // Predicated region
    $region2: #{tpu_custom_call.1} parent=1 // pred_check
      _
    $region3: #{tpu_custom_call.1} parent=1 // pred_check_branch
      %9 = sbr.rel (0) target = $region5
    $region4: #{tpu_custom_call.1} parent=1 // pred_region
      %s11 = ssub.s32 1024, 1024
      %12 = vsyncadd [#allocation3], %s11
      %s14 = sshll.u32 [#allocation2], 4
      %s15 = int_to_ptr.vmem [resolvable:$true] %s14
      %17 = dma.hbm_to_vmem [thread:$0]  %s0, 1024, %s15, [#allocation3]
    $region5: #{tpu_custom_call.1} parent=1 // pred_fallthru
      _
    // Predicated region
    $region6: #{tpu_custom_call.1} parent=1 // pred_check
      _
    $region7: #{tpu_custom_call.1} parent=1 // pred_check_branch
      %19 = sbr.rel (0) target = $region9
    $region8: #{tpu_custom_call.1} parent=1 // pred_region
      %20 = dma.done [#allocation3], 1024
    $region9: #{tpu_custom_call.1} parent=1 // pred_fallthru
      _
    %v21 = vld [vmem:[#allocation2] sm:$0xff]
    %v22 = vld [vmem:[#allocation2 + $0x8] sm:$0xff]
    %v23 = vld [vmem:[#allocation2 + $0x10] sm:$0xff]
    %v24 = vld [vmem:[#allocation2 + $0x18] sm:$0xff]
    %v25 = vld [vmem:[#allocation2 + $0x20] sm:$0xff]
    %v26 = vld [vmem:[#allocation2 + $0x28] sm:$0xff]
    %v27 = vld [vmem:[#allocation2 + $0x30] sm:$0xff]
    %v28 = vld [vmem:[#allocation2 + $0x38] sm:$0xff]
    %v29 = vcvt.s32.f32 %v21
    %v30 = vcvt.s32.f32 %v22
    %v31 = vcvt.s32.f32 %v23
    %v32 = vcvt.s32.f32 %v24
    %v33 = vcvt.s32.f32 %v25
    %v34 = vcvt.s32.f32 %v26
    %v35 = vcvt.s32.f32 %v27
    %v36 = vcvt.s32.f32 %v28
    %v37 = vmul.f32 %v29, 0.0078125
    %v38 = vmul.f32 %v30, 0.0078125
    %v39 = vmul.f32 %v31, 0.0078125
    %v40 = vmul.f32 %v32, 0.0078125
    %v41 = vmul.f32 %v33, 0.0078125
    %v42 = vmul.f32 %v34, 0.0078125
    %v43 = vmul.f32 %v35, 0.0078125
    %v44 = vmul.f32 %v36, 0.0078125
    %v45 = vsub.f32 %v37, 1.0
    %v46 = vsub.f32 %v38, 1.0
    %v47 = vsub.f32 %v39, 1.0
    %v48 = vsub.f32 %v40, 1.0
    %v49 = vsub.f32 %v41, 1.0
    %v50 = vsub.f32 %v42, 1.0
    %v51 = vsub.f32 %v43, 1.0
    %v52 = vsub.f32 %v44, 1.0
    %53 = vst [vmem:[#allocation5] sm:$0xff] %v45
    %54 = vst [vmem:[#allocation5 + $0x8] sm:$0xff] %v46
    %55 = vst [vmem:[#allocation5 + $0x10] sm:$0xff] %v47
    %56 = vst [vmem:[#allocation5 + $0x18] sm:$0xff] %v48
    %57 = vst [vmem:[#allocation5 + $0x20] sm:$0xff] %v49
    %58 = vst [vmem:[#allocation5 + $0x28] sm:$0xff] %v50
    %59 = vst [vmem:[#allocation5 + $0x30] sm:$0xff] %v51
    %60 = vst [vmem:[#allocation5 + $0x38] sm:$0xff] %v52
    // Predicated region
    $region10: #{tpu_custom_call.1} parent=1 // pred_check
      _
    $region11: #{tpu_custom_call.1} parent=1 // pred_check_branch
      %62 = sbr.rel (0) target = $region13
    $region12: #{tpu_custom_call.1} parent=1 // pred_region
      %s64 = ssub.s32 1024, 1024
      %65 = vsyncadd [#allocation4], %s64
      %s67 = sshll.u32 [#allocation5], 4
      %s68 = int_to_ptr.vmem [resolvable:$true] %s67
      %70 = dma.vmem_to_hbm [thread:$0]  %s68, 1024, %s1, [#allocation4]
    $region13: #{tpu_custom_call.1} parent=1 // pred_fallthru
      _
    // Predicated region
    $region14: #{tpu_custom_call.1} parent=1 // pred_check
      _
    $region15: #{tpu_custom_call.1} parent=1 // pred_check_branch
      %72 = sbr.rel (0) target = $region17
    $region16: #{tpu_custom_call.1} parent=1 // pred_region
      %73 = dma.done [#allocation4], 1024
    $region17: #{tpu_custom_call.1} parent=1 // pred_fallthru
      _
    %74 = vsyncpa [#allocation3], 1
    %75 = vsyncpa [#allocation4], 1

</llo_original>
